<compile_context>
chip_gen: v7x
topology: tpu7x:2x2x1
jax: 0.10.0
libtpu: 0.0.40
codegen_flags: <defaults>
</compile_context>

<pallas_src>
import jax
import jax.numpy as jnp
from jax.experimental import pallas as pl
from jax.experimental.pallas import tpu as pltpu


def _round_up(n, m):
    return (n + m - 1) // m * m


# ----------------------------------------------------------------------------
# Kernel
# ----------------------------------------------------------------------------
def highway_first_kernel(sx_ref, w_ref, b_ref, o_ref):
    """One batch tile.

    sx_ref: [tm, Hp+Ip]   f32 fused [s_pad | x_pad] operand
    w_ref:  [Hp+Ip, 2*Hp] fused stacked weight [[Whh|Wth]; [Whx|Wtx]] (bf16/f32)
    b_ref:  [1, 2*Hp]     fused bias [b_hh | b_th], f32
    o_ref:  [tm, Hp]
    """
    hp = o_ref.shape[-1]
    sx = sx_ref[...]                       # f32
    s = sx[:, :hp]                         # f32 hidden state for the blend
    mm_dtype = w_ref.dtype

    # Single wide MXU matmul (f32 accumulation) + fused bias.
    pre = jnp.dot(sx.astype(mm_dtype), w_ref[...],
                  preferred_element_type=jnp.float32) + b_ref[...]

    # Static, lane-tile-aligned slices (Hp % 128 == 0).
    h = jnp.tanh(pre[:, :hp])
    # sigmoid(z) == 0.5 * (1 + tanh(z / 2)): one EUP transcendental.
    t = 0.5 * (1.0 + jnp.tanh(0.5 * pre[:, hp:]))

    # h * t + s * (1 - t)  ==  s + t * (h - s)   (one fewer VPU multiply)
    o_ref[...] = (s + t * (h - s)).astype(o_ref.dtype)


# ----------------------------------------------------------------------------
# One-time parameter preparation
# ----------------------------------------------------------------------------
def prepare_params(params, hidden_size, input_size, matmul_dtype=jnp.bfloat16):
    """Transpose PyTorch [out, in] -> [in, out], fuse h/t pairs along the
    output dim, stack the recurrent and input weights along K, pad both feature
    dims to multiples of 128 lanes, cast to the MXU dtype.  Call once."""
    H, I = hidden_size, input_size
    Hp, Ip = _round_up(H, 128), _round_up(I, 128)

    def pad_to(w, rows, cols):
        return jnp.pad(w, ((0, rows - w.shape[0]), (0, cols - w.shape[1])))

    # Recurrent block rows (K = Hp) and input block rows (K = Ip); padded
    # rows/cols are zero so the math is unchanged.
    wh = jnp.concatenate([pad_to(params["linear_h_h.weight"].T, Hp, Hp),
                          pad_to(params["linear_t_h.weight"].T, Hp, Hp)],
                         axis=1)                                   # [Hp, 2Hp]
    wx = jnp.concatenate([pad_to(params["linear_h_x.weight"].T, Ip, Hp),
                          pad_to(params["linear_t_x.weight"].T, Ip, Hp)],
                         axis=1)                                   # [Ip, 2Hp]
    w = jnp.concatenate([wh, wx], axis=0).astype(matmul_dtype)     # [Hp+Ip, 2Hp]

    b = jnp.concatenate([jnp.pad(params["linear_h_h.bias"], (0, Hp - H)),
                         jnp.pad(params["linear_t_h.bias"], (0, Hp - H))])
    b = b[None, :].astype(jnp.float32)                             # [1, 2Hp]

    return {"w": w, "b": b, "H": H, "I": I, "Hp": Hp, "Ip": Ip}


# ----------------------------------------------------------------------------
# Generation-/VMEM-aware tiling
# ----------------------------------------------------------------------------
def _device_kind():
    try:
        return jax.devices()[0].device_kind.lower()
    except Exception:
        return ""


def _vmem_budget_bytes(kind):
    if "v7" in kind:
        return 56 * 1024 * 1024     # 64 MiB physical; leave compiler headroom
    return 100 * 1024 * 1024        # v5e / v6e: 128 MiB physical


def _pick_tm(batch, per_row_bytes, fixed_bytes, budget, multicore):
    """VMEM-aware batch tile.  Single-TC chips (v5e/v6e): largest fitting tm
    (grid=1 when possible).  v7x: prefer an even grid of >= 2 steps so both
    TensorCores get balanced work, then the largest fitting tm."""
    cands = [tm for tm in range(8, batch + 1, 8) if batch % tm == 0]
    if not cands:
        cands = [batch]
    fitting = [tm for tm in cands
               if fixed_bytes + tm * per_row_bytes <= 0.7 * budget]
    if not fitting:
        fitting = [min(cands)]
    if multicore:
        even = [tm for tm in fitting
                if batch // tm >= 2 and (batch // tm) % 2 == 0]
        pool = even or [tm for tm in fitting if batch // tm >= 2] or fitting
        return max(pool)
    return max(fitting)


# ----------------------------------------------------------------------------
# Wrapper
# ----------------------------------------------------------------------------
def highway_first_layer(s, x, prep, *, tm=None):
    """s: [B, H] hidden state, x: [B, I] input, prep: prepare_params() output.
    Returns [B, H] in s.dtype."""
    B, H = s.shape
    Hp, Ip, I = prep["Hp"], prep["Ip"], prep["I"]
    assert H == prep["H"] and x.shape == (B, I)
    Kp = Hp + Ip

    # Fused, lane-padded [s_pad | x_pad] operand (one XLA pad+concat pass).
    # TODO(synk): for a recurrence, keep s in its padded layout across steps
    # and return the padded output, slicing to H only once at the very end.
    sx = jnp.concatenate(
        [jnp.pad(s.astype(jnp.float32), ((0, 0), (0, Hp - H))),
         jnp.pad(x.astype(jnp.float32), ((0, 0), (0, Ip - I)))], axis=1)

    kind = _device_kind()
    budget = _vmem_budget_bytes(kind)
    multicore = "v7" in kind

    w_bytes = (prep["w"].size * prep["w"].dtype.itemsize
               + prep["b"].size * 4)
    # Conservative sizing: activations double-buffered + [tm, 2Hp] f32 slab;
    # weights counted double-buffered in case the single-buffer request falls
    # back to the default pipeline.
    per_row = 2 * (Kp * 4 + Hp * s.dtype.itemsize) + 2 * Hp * 4
    if tm is None:
        tm = _pick_tm(B, per_row, 2 * w_bytes, budget, multicore)
    # TODO(synk): ragged batches (B % tm != 0) need a padded batch or a
    # pl.when-masked tail tile; the auto-picked tm always divides B.
    assert B % tm == 0
    grid = (B // tm,)

    def call(single_buffer_weights):
        w_kw = ({"pipeline_mode": pl.Buffered(1)}
                if single_buffer_weights else {})
        return pl.pallas_call(
            highway_first_kernel,
            out_shape=jax.ShapeDtypeStruct((B, Hp), s.dtype),
            grid_spec=pltpu.PrefetchScalarGridSpec(
                num_scalar_prefetch=0,
                grid=grid,
                in_specs=[
                    pl.BlockSpec((tm, Kp), lambda i: (i, 0)),              # [s|x]
                    pl.BlockSpec((Kp, 2 * Hp), lambda i: (0, 0), **w_kw),  # W
                    pl.BlockSpec((1, 2 * Hp), lambda i: (0, 0), **w_kw),   # bias
                ],
                out_specs=pl.BlockSpec((tm, Hp), lambda i: (i, 0)),
            ),
            compiler_params=pltpu.CompilerParams(
                dimension_semantics=("parallel",),
                vmem_limit_bytes=budget),
        )(sx, prep["w"], prep["b"])

    try:
        out = jax.block_until_ready(call(True))
    except Exception:
        # Fallback: default double-buffered pipeline for the weight blocks.
        out = jax.block_until_ready(call(False))

    return out[:, :H]


# ----------------------------------------------------------------------------
# Init / reference / demo
# ----------------------------------------------------------------------------
def init_params(key, hidden_size, input_size, dtype=jnp.float32):
    """Deterministic init mimicking nn.Linear's U(-1/sqrt(fan_in), 1/sqrt(fan_in))."""
    ks = jax.random.split(key, 6)
    bh = 1.0 / jnp.sqrt(hidden_size)
    bi = 1.0 / jnp.sqrt(input_size)
    return {
        "linear_h_h.weight": jax.random.uniform(ks[0], (hidden_size, hidden_size), dtype, -bh, bh),
        "linear_h_h.bias":   jax.random.uniform(ks[1], (hidden_size,), dtype, -bh, bh),
        "linear_t_h.weight": jax.random.uniform(ks[2], (hidden_size, hidden_size), dtype, -bh, bh),
        "linear_t_h.bias":   jax.random.uniform(ks[3], (hidden_size,), dtype, -bh, bh),
        "linear_h_x.weight": jax.random.uniform(ks[4], (hidden_size, input_size), dtype, -bi, bi),
        "linear_t_x.weight": jax.random.uniform(ks[5], (hidden_size, input_size), dtype, -bi, bi),
    }


def reference(s, x, params):
    """Pure-JAX reference matching the PyTorch forward."""
    h = jnp.tanh(x @ params["linear_h_x.weight"].T
                 + s @ params["linear_h_h.weight"].T + params["linear_h_h.bias"])
    t = jax.nn.sigmoid(x @ params["linear_t_x.weight"].T
                       + s @ params["linear_t_h.weight"].T + params["linear_t_h.bias"])
    return h * t + s * (1.0 - t)


if __name__ == "__main__":
    batch, hidden_size, input_size = 16, 32, 16

    key = jax.random.PRNGKey(0)
    k_s, k_x, k_p = jax.random.split(key, 3)

    s = jax.random.normal(k_s, (batch, hidden_size), jnp.float32)
    x = jax.random.normal(k_x, (batch, input_size), jnp.float32)
    params = init_params(k_p, hidden_size, input_size)
    ref = reference(s, x, params)

    # Exact-ish (f32 MXU operands) path: correctness reference.
    prep_f32 = prepare_params(params, hidden_size, input_size,
                              matmul_dtype=jnp.float32)
    out_f32 = jax.block_until_ready(highway_first_layer(s, x, prep_f32))
    assert out_f32.shape == (batch, hidden_size)
    assert jnp.allclose(out_f32, ref, atol=1e-5, rtol=1e-5), "f32 path mismatch vs reference"

    # Fast (bf16-operand MXU, f32 accumulation) path: the one to ship.
    prep_bf16 = prepare_params(params, hidden_size, input_size)   # default bf16
    out_bf16 = jax.block_until_ready(highway_first_layer(s, x, prep_bf16))
    assert out_bf16.shape == (batch, hidden_size)
    assert jnp.allclose(out_bf16, ref, atol=5e-2, rtol=5e-2), "bf16 path mismatch vs reference"

    print("KERNEL_OK")
</pallas_src>

<mosaic_0001>
module attributes {stable_mosaic.version = 11 : i64} {
  func.func @highway_first_kernel(%arg0: i32, %arg1: memref<16x256xf32, #tpu.memory_space<vmem>>, %arg2: memref<256x256xf32, #tpu.memory_space<vmem>>, %arg3: memref<1x256xf32, #tpu.memory_space<vmem>>, %arg4: memref<16x128xf32, #tpu.memory_space<vmem>>) attributes {dimension_semantics = [#tpu.dimension_semantics<parallel>], iteration_bounds = array<i64: 1>, scalar_prefetch = 0 : i64, scratch_operands = 0 : i64, tpu.core_type = #tpu.core_type<tc>, window_params = [{transform_indices = @transform_0, window_bounds = array<i64: 16, 256>}, {pipeline_mode = #tpu.pipeline_mode<synchronous>, transform_indices = @transform_1, window_bounds = array<i64: 256, 256>}, {pipeline_mode = #tpu.pipeline_mode<synchronous>, transform_indices = @transform_2, window_bounds = array<i64: 1, 256>}, {transform_indices = @transform_3, window_bounds = array<i64: 16, 128>}]} {
    %c0 = arith.constant 0 : index
    %c0_0 = arith.constant 0 : index
    %0 = vector.load %arg1[%c0, %c0_0] : memref<16x256xf32, #tpu.memory_space<vmem>>, vector<16x256xf32>
    %1 = vector.extract_strided_slice %0 {offsets = [0, 0], sizes = [16, 128], strides = [1, 1]} : vector<16x256xf32> to vector<16x128xf32>
    %c0_1 = arith.constant 0 : index
    %c0_2 = arith.constant 0 : index
    %2 = vector.load %arg2[%c0_1, %c0_2] : memref<256x256xf32, #tpu.memory_space<vmem>>, vector<256x256xf32>
    %cst = arith.constant dense<0.000000e+00> : vector<16x256xf32>
    %3 = tpu.matmul %0, %2, %cst {dimension_numbers = #tpu.dot_dimension_numbers<[1], [0], [0], [1], [0, 0, 1, 1], [], []>} : vector<16x256xf32>, vector<256x256xf32>, vector<16x256xf32> -> vector<16x256xf32>
    %c0_3 = arith.constant 0 : index
    %c0_4 = arith.constant 0 : index
    %4 = vector.load %arg3[%c0_3, %c0_4] : memref<1x256xf32, #tpu.memory_space<vmem>>, vector<1x256xf32>
    %5 = vector.broadcast %4 : vector<1x256xf32> to vector<16x256xf32>
    %6 = arith.addf %3, %5 : vector<16x256xf32>
    %7 = vector.extract_strided_slice %6 {offsets = [0, 0], sizes = [16, 128], strides = [1, 1]} : vector<16x256xf32> to vector<16x128xf32>
    %8 = math.tanh %7 : vector<16x128xf32>
    %9 = vector.extract_strided_slice %6 {offsets = [0, 128], sizes = [16, 128], strides = [1, 1]} : vector<16x256xf32> to vector<16x128xf32>
    %cst_5 = arith.constant 5.000000e-01 : f32
    %10 = vector.broadcast %cst_5 : f32 to vector<16x128xf32>
    %11 = arith.mulf %10, %9 : vector<16x128xf32>
    %12 = math.tanh %11 : vector<16x128xf32>
    %cst_6 = arith.constant 1.000000e+00 : f32
    %13 = vector.broadcast %cst_6 : f32 to vector<16x128xf32>
    %14 = arith.addf %13, %12 : vector<16x128xf32>
    %cst_7 = arith.constant 5.000000e-01 : f32
    %15 = vector.broadcast %cst_7 : f32 to vector<16x128xf32>
    %16 = arith.mulf %15, %14 : vector<16x128xf32>
    %17 = arith.subf %8, %1 : vector<16x128xf32>
    %18 = arith.mulf %16, %17 : vector<16x128xf32>
    %19 = arith.addf %1, %18 : vector<16x128xf32>
    %c0_8 = arith.constant 0 : index
    %c0_9 = arith.constant 0 : index
    %20 = vector.load %arg4[%c0_8, %c0_9] : memref<16x128xf32, #tpu.memory_space<vmem>>, vector<16x128xf32>
    tpu.vector_store %arg4[%c0_8, %c0_9], %19 {strides = array<i32>} : memref<16x128xf32, #tpu.memory_space<vmem>>, vector<16x128xf32>,
    return
  }
  func.func @transform_0(%arg0: i32) -> (i32, i32) {
    %c0_i32 = arith.constant 0 : i32
    %c0_i32_0 = arith.constant 0 : i32
    return %arg0, %c0_i32 : i32, i32
  }
  func.func @transform_1(%arg0: i32) -> (i32, i32) {
    %c0_i32 = arith.constant 0 : i32
    %c0_i32_0 = arith.constant 0 : i32
    %c0_i32_1 = arith.constant 0 : i32
    return %c0_i32, %c0_i32_0 : i32, i32
  }
  func.func @transform_2(%arg0: i32) -> (i32, i32) {
    %c0_i32 = arith.constant 0 : i32
    %c0_i32_0 = arith.constant 0 : i32
    %c0_i32_1 = arith.constant 0 : i32
    return %c0_i32, %c0_i32_0 : i32, i32
  }
  func.func @transform_3(%arg0: i32) -> (i32, i32) {
    %c0_i32 = arith.constant 0 : i32
    %c0_i32_0 = arith.constant 0 : i32
    return %arg0, %c0_i32 : i32, i32
  }
}

module attributes {stable_mosaic.version = 11 : i64} {
  func.func @highway_first_kernel(%arg0: i32, %arg1: memref<16x256xf32, #tpu.memory_space<vmem>>, %arg2: memref<256x256xf32, #tpu.memory_space<vmem>>, %arg3: memref<1x256xf32, #tpu.memory_space<vmem>>, %arg4: memref<16x128xf32, #tpu.memory_space<vmem>>) attributes {dimension_semantics = [#tpu.dimension_semantics<parallel>], iteration_bounds = array<i64: 1>, scalar_prefetch = 0 : i64, scratch_operands = 0 : i64, tpu.core_type = #tpu.core_type<tc>, window_params = [{transform_indices = @transform_0, window_bounds = array<i64: 16, 256>}, {pipeline_mode = #tpu.pipeline_mode<synchronous>, transform_indices = @transform_1, window_bounds = array<i64: 256, 256>}, {pipeline_mode = #tpu.pipeline_mode<synchronous>, transform_indices = @transform_2, window_bounds = array<i64: 1, 256>}, {transform_indices = @transform_3, window_bounds = array<i64: 16, 128>}]} {
    %c0 = arith.constant 0 : index
    %c0_0 = arith.constant 0 : index
    %0 = vector.load %arg1[%c0, %c0_0] : memref<16x256xf32, #tpu.memory_space<vmem>>, vector<16x256xf32>
    %1 = vector.extract_strided_slice %0 {offsets = [0, 0], sizes = [16, 128], strides = [1, 1]} : vector<16x256xf32> to vector<16x128xf32>
    %c0_1 = arith.constant 0 : index
    %c0_2 = arith.constant 0 : index
    %2 = vector.load %arg2[%c0_1, %c0_2] : memref<256x256xf32, #tpu.memory_space<vmem>>, vector<256x256xf32>
    %cst = arith.constant dense<0.000000e+00> : vector<16x256xf32>
    %3 = tpu.matmul %0, %2, %cst {dimension_numbers = #tpu.dot_dimension_numbers<[1], [0], [0], [1], [0, 0, 1, 1], [], []>} : vector<16x256xf32>, vector<256x256xf32>, vector<16x256xf32> -> vector<16x256xf32>
    %c0_3 = arith.constant 0 : index
    %c0_4 = arith.constant 0 : index
    %4 = vector.load %arg3[%c0_3, %c0_4] : memref<1x256xf32, #tpu.memory_space<vmem>>, vector<1x256xf32>
    %5 = vector.broadcast %4 : vector<1x256xf32> to vector<16x256xf32>
    %6 = arith.addf %3, %5 : vector<16x256xf32>
    %7 = vector.extract_strided_slice %6 {offsets = [0, 0], sizes = [16, 128], strides = [1, 1]} : vector<16x256xf32> to vector<16x128xf32>
    %8 = math.tanh %7 : vector<16x128xf32>
    %9 = vector.extract_strided_slice %6 {offsets = [0, 128], sizes = [16, 128], strides = [1, 1]} : vector<16x256xf32> to vector<16x128xf32>
    %cst_5 = arith.constant 5.000000e-01 : f32
    %10 = vector.broadcast %cst_5 : f32 to vector<16x128xf32>
    %11 = arith.mulf %10, %9 : vector<16x128xf32>
    %12 = math.tanh %11 : vector<16x128xf32>
    %cst_6 = arith.constant 1.000000e+00 : f32
    %13 = vector.broadcast %cst_6 : f32 to vector<16x128xf32>
    %14 = arith.addf %13, %12 : vector<16x128xf32>
    %cst_7 = arith.constant 5.000000e-01 : f32
    %15 = vector.broadcast %cst_7 : f32 to vector<16x128xf32>
    %16 = arith.mulf %15, %14 : vector<16x128xf32>
    %17 = arith.subf %8, %1 : vector<16x128xf32>
    %18 = arith.mulf %16, %17 : vector<16x128xf32>
    %19 = arith.addf %1, %18 : vector<16x128xf32>
    %c0_8 = arith.constant 0 : index
    %c0_9 = arith.constant 0 : index
    %20 = vector.load %arg4[%c0_8, %c0_9] : memref<16x128xf32, #tpu.memory_space<vmem>>, vector<16x128xf32>
    tpu.vector_store %arg4[%c0_8, %c0_9], %19 {strides = array<i32>} : memref<16x128xf32, #tpu.memory_space<vmem>>, vector<16x128xf32>,
    return
  }
  func.func @transform_0(%arg0: i32) -> (i32, i32) {
    %c0_i32 = arith.constant 0 : i32
    %c0_i32_0 = arith.constant 0 : i32
    return %arg0, %c0_i32 : i32, i32
  }
  func.func @transform_1(%arg0: i32) -> (i32, i32) {
    %c0_i32 = arith.constant 0 : i32
    %c0_i32_0 = arith.constant 0 : i32
    %c0_i32_1 = arith.constant 0 : i32
    return %c0_i32, %c0_i32_0 : i32, i32
  }
  func.func @transform_2(%arg0: i32) -> (i32, i32) {
    %c0_i32 = arith.constant 0 : i32
    %c0_i32_0 = arith.constant 0 : i32
    %c0_i32_1 = arith.constant 0 : i32
    return %c0_i32, %c0_i32_0 : i32, i32
  }
  func.func @transform_3(%arg0: i32) -> (i32, i32) {
    %c0_i32 = arith.constant 0 : i32
    %c0_i32_0 = arith.constant 0 : i32
    return %arg0, %c0_i32 : i32, i32
  }
}

</mosaic_0001>

<llo_original>
// kernel: tpu_custom_call.1
$region0: #{tpu_custom_call.1}
  #allocation0 [shape = 'u32[]', space=smem, size = 0x4, offset = 0x4, fixed_abs, tag = 'smem constant byte address 0x4 - core index']
  #allocation1 [shape = 'u32[144,128]{1,0:T(1,128)}', space=vmem, size = 0x12000, scoped, tag = 'internal scratch']
  %s0 = inlined_call_operand.hbm [shape: f32[16,256], index: 0, kind: input, shape index: {}]
  %s1 = inlined_call_operand.hbm [shape: f32[256,256], index: 1, kind: input, shape index: {}]
  %s2 = inlined_call_operand.hbm [shape: f32[1,256], index: 2, kind: input, shape index: {}]
  %s3 = inlined_call_operand.hbm [shape: f32[16,128], index: 3, kind: output, shape index: {}]
  %s4 = sld [smem:[#allocation0]]
  $region34: #{tpu_custom_call.1} parent=0
    _
  %s6 = ssub.s32 1, %s4
  %s7 = scalar_select 0, %s6, %s4
  $region1: #{tpu_custom_call.1} parent=0
    #allocation2 [shape = 'u8[16384]{0}', space=vmem, size = 0x4000, scoped, tag = 'input window, operand 0, single buffered']
    #allocation3 [shape = 's32[1]{0}', space=sflag, size = 0x4, scoped, tag = 'scoped memory for tpu_custom_call.1']
    #allocation4 [shape = 's32[1]{0}', space=sflag, size = 0x4, scoped, tag = 'scoped memory for tpu_custom_call.1']
    #allocation5 [shape = 'u8[262144]{0}', space=vmem, size = 0x40000, scoped, tag = 'input window, operand 1, single buffered']
    #allocation6 [shape = 's32[1]{0}', space=sflag, size = 0x4, scoped, tag = 'scoped memory for tpu_custom_call.1']
    #allocation7 [shape = 'u8[1024]{0}', space=vmem, size = 0x400, scoped, tag = 'input window, operand 2, single buffered']
    #allocation8 [shape = 'u8[8192]{0}', space=vmem, size = 0x2000, scoped, tag = 'output window, operand 0, single buffered']
    %8 = vsyncpa [#allocation3], 0
    %9 = vsyncpa [#allocation6], 0
    %10 = vsyncpa [#allocation4], 0
    // Predicated region
    $region2: #{tpu_custom_call.1} parent=1 // pred_check
      _
    $region3: #{tpu_custom_call.1} parent=1 // pred_check_branch
      %12 = sbr.rel (0) target = $region5
    $region4: #{tpu_custom_call.1} parent=1 // pred_region
      %s14 = ssub.s32 512, 512
      %15 = vsyncadd [#allocation3], %s14
      %s16 = sshll.u32 [#allocation2], 4
      %s17 = int_to_ptr.vmem [resolvable:$true] %s16
      %22 = dma.hbm_to_vmem [thread:$0]  %s0, 512, %s17, [#allocation3], 256, 256, 16
    $region5: #{tpu_custom_call.1} parent=1 // pred_fallthru
      _
    // Predicated region
    $region6: #{tpu_custom_call.1} parent=1 // pred_check
      _
    $region7: #{tpu_custom_call.1} parent=1 // pred_check_branch
      %24 = sbr.rel (0) target = $region9
    $region8: #{tpu_custom_call.1} parent=1 // pred_region
      %s26 = ssub.s32 8192, 8192
      %27 = vsyncadd [#allocation6], %s26
      %s28 = sshll.u32 [#allocation5], 4
      %s29 = int_to_ptr.vmem [resolvable:$true] %s28
      %34 = dma.hbm_to_vmem [thread:$0]  %s1, 8192, %s29, [#allocation6], 256, 256, 16
    $region9: #{tpu_custom_call.1} parent=1 // pred_fallthru
      _
    // Predicated region
    $region10: #{tpu_custom_call.1} parent=1 // pred_check
      _
    $region11: #{tpu_custom_call.1} parent=1 // pred_check_branch
      %36 = sbr.rel (0) target = $region13
    $region12: #{tpu_custom_call.1} parent=1 // pred_region
      %s38 = ssub.s32 32, 32
      %39 = vsyncadd [#allocation6], %s38
      %s41 = sshll.u32 [#allocation7], 4
      %s42 = int_to_ptr.vmem [resolvable:$true] %s41
      %44 = dma.hbm_to_vmem [thread:$0]  %s2, 32, %s42, [#allocation6]
    $region13: #{tpu_custom_call.1} parent=1 // pred_fallthru
      _
    // Predicated region
    $region14: #{tpu_custom_call.1} parent=1 // pred_check
      _
    $region15: #{tpu_custom_call.1} parent=1 // pred_check_branch
      %46 = sbr.rel (0) target = $region17
    $region16: #{tpu_custom_call.1} parent=1 // pred_region
      %47 = dma.done [#allocation3], 512
    $region17: #{tpu_custom_call.1} parent=1 // pred_fallthru
      _
    // Predicated region
    $region18: #{tpu_custom_call.1} parent=1 // pred_check
      _
    $region19: #{tpu_custom_call.1} parent=1 // pred_check_branch
      %49 = sbr.rel (0) target = $region21
    $region20: #{tpu_custom_call.1} parent=1 // pred_region
      %50 = dma.done [#allocation6], 8192
    $region21: #{tpu_custom_call.1} parent=1 // pred_fallthru
      _
    // Predicated region
    $region22: #{tpu_custom_call.1} parent=1 // pred_check
      _
    $region23: #{tpu_custom_call.1} parent=1 // pred_check_branch
      %52 = sbr.rel (0) target = $region25
    $region24: #{tpu_custom_call.1} parent=1 // pred_region
      %53 = dma.done [#allocation6], 32
    $region25: #{tpu_custom_call.1} parent=1 // pred_fallthru
      _
    %v54 = vld [vmem:[#allocation2] sm:$0xff]
    %v55 = vld [vmem:[#allocation2 + $0x8] sm:$0xff]
    %v56 = vld [vmem:[#allocation2 + $0x10] sm:$0xff]
    %v57 = vld [vmem:[#allocation2 + $0x18] sm:$0xff]
    %v58 = vld [vmem:[#allocation5] sm:$0xff]
    %v59 = vld [vmem:[#allocation5 + $0x8] sm:$0xff]
    %v60 = vld [vmem:[#allocation5 + $0x10] sm:$0xff]
    %v61 = vld [vmem:[#allocation5 + $0x18] sm:$0xff]
    %v62 = vld [vmem:[#allocation5 + $0x20] sm:$0xff]
    %v63 = vld [vmem:[#allocation5 + $0x28] sm:$0xff]
    %v64 = vld [vmem:[#allocation5 + $0x30] sm:$0xff]
    %v65 = vld [vmem:[#allocation5 + $0x38] sm:$0xff]
    %v66 = vld [vmem:[#allocation5 + $0x40] sm:$0xff]
    %v67 = vld [vmem:[#allocation5 + $0x48] sm:$0xff]
    %v68 = vld [vmem:[#allocation5 + $0x50] sm:$0xff]
    %v69 = vld [vmem:[#allocation5 + $0x58] sm:$0xff]
    %v70 = vld [vmem:[#allocation5 + $0x60] sm:$0xff]
    %v71 = vld [vmem:[#allocation5 + $0x68] sm:$0xff]
    %v72 = vld [vmem:[#allocation5 + $0x70] sm:$0xff]
    %v73 = vld [vmem:[#allocation5 + $0x78] sm:$0xff]
    %v74 = vld [vmem:[#allocation5 + $0x80] sm:$0xff]
    %v75 = vld [vmem:[#allocation5 + $0x88] sm:$0xff]
    %v76 = vld [vmem:[#allocation5 + $0x90] sm:$0xff]
    %v77 = vld [vmem:[#allocation5 + $0x98] sm:$0xff]
    %v78 = vld [vmem:[#allocation5 + $0xa0] sm:$0xff]
    %v79 = vld [vmem:[#allocation5 + $0xa8] sm:$0xff]
    %v80 = vld [vmem:[#allocation5 + $0xb0] sm:$0xff]
    %v81 = vld [vmem:[#allocation5 + $0xb8] sm:$0xff]
    %v82 = vld [vmem:[#allocation5 + $0xc0] sm:$0xff]
    %v83 = vld [vmem:[#allocation5 + $0xc8] sm:$0xff]
    %v84 = vld [vmem:[#allocation5 + $0xd0] sm:$0xff]
    %v85 = vld [vmem:[#allocation5 + $0xd8] sm:$0xff]
    %v86 = vld [vmem:[#allocation5 + $0xe0] sm:$0xff]
    %v87 = vld [vmem:[#allocation5 + $0xe8] sm:$0xff]
    %v88 = vld [vmem:[#allocation5 + $0xf0] sm:$0xff]
    %v89 = vld [vmem:[#allocation5 + $0xf8] sm:$0xff]
    %v90 = vld [vmem:[#allocation5 + $0x100] sm:$0xff]
    %v91 = vld [vmem:[#allocation5 + $0x108] sm:$0xff]
    %v92 = vld [vmem:[#allocation5 + $0x110] sm:$0xff]
    %v93 = vld [vmem:[#allocation5 + $0x118] sm:$0xff]
    %v94 = vld [vmem:[#allocation5 + $0x120] sm:$0xff]
    %v95 = vld [vmem:[#allocation5 + $0x128] sm:$0xff]
    %v96 = vld [vmem:[#allocation5 + $0x130] sm:$0xff]
    %v97 = vld [vmem:[#allocation5 + $0x138] sm:$0xff]
    %v98 = vld [vmem:[#allocation5 + $0x140] sm:$0xff]
    %v99 = vld [vmem:[#allocation5 + $0x148] sm:$0xff]
    %v100 = vld [vmem:[#allocation5 + $0x150] sm:$0xff]
    %v101 = vld [vmem:[#allocation5 + $0x158] sm:$0xff]
    %v102 = vld [vmem:[#allocation5 + $0x160] sm:$0xff]
    %v103 = vld [vmem:[#allocation5 + $0x168] sm:$0xff]
    %v104 = vld [vmem:[#allocation5 + $0x170] sm:$0xff]
    %v105 = vld [vmem:[#allocation5 + $0x178] sm:$0xff]
    %v106 = vld [vmem:[#allocation5 + $0x180] sm:$0xff]
    %v107 = vld [vmem:[#allocation5 + $0x188] sm:$0xff]
    %v108 = vld [vmem:[#allocation5 + $0x190] sm:$0xff]
    %v109 = vld [vmem:[#allocation5 + $0x198] sm:$0xff]
    %v110 = vld [vmem:[#allocation5 + $0x1a0] sm:$0xff]
    %v111 = vld [vmem:[#allocation5 + $0x1a8] sm:$0xff]
    %v112 = vld [vmem:[#allocation5 + $0x1b0] sm:$0xff]
    %v113 = vld [vmem:[#allocation5 + $0x1b8] sm:$0xff]
    %v114 = vld [vmem:[#allocation5 + $0x1c0] sm:$0xff]
    %v115 = vld [vmem:[#allocation5 + $0x1c8] sm:$0xff]
    %v116 = vld [vmem:[#allocation5 + $0x1d0] sm:$0xff]
    %v117 = vld [vmem:[#allocation5 + $0x1d8] sm:$0xff]
    %v118 = vld [vmem:[#allocation5 + $0x1e0] sm:$0xff]
    %v119 = vld [vmem:[#allocation5 + $0x1e8] sm:$0xff]
    %v120 = vld [vmem:[#allocation5 + $0x1f0] sm:$0xff]
    %v121 = vld [vmem:[#allocation5 + $0x1f8] sm:$0xff]
    %v122 = vld [vmem:[#allocation7] sm:$0x3]
    %v124 = vlaneseq
    %v125 = vshrl.u32 %v124, 7
    %v126 = vsub.s32 0, %v125
    %v127 = vrot.slane %v122, %v126
    %v128 = vlaneseq
    %v129 = vshrl.u32 %v128, 7
    %v130 = vsub.s32 1, %v129
    %v131 = vrot.slane %v122, %v130
    %134 = vmatprep.subr.mxu0 %v59
    %135 = vmatpush1.msra.mxu0 %v58
    %136 = vmatprep.subr.mxu0 %v61
    %137 = vmatpush1.msra.mxu0 %v60
    %138 = vmatprep.subr.mxu0 %v63
    %139 = vmatpush1.msra.mxu0 %v62
    %140 = vmatprep.subr.mxu0 %v65
    %141 = vmatpush1.msra.mxu0 %v64
    %142 = vmatprep.subr.mxu0 %v67
    %143 = vmatpush1.msra.mxu0 %v66
    %144 = vmatprep.subr.mxu0 %v69
    %145 = vmatpush1.msra.mxu0 %v68
    %146 = vmatprep.subr.mxu0 %v71
    %147 = vmatpush1.msra.mxu0 %v70
    %148 = vmatprep.subr.mxu0 %v73
    %149 = vmatpush1.msra.mxu0 %v72
    %150 = vmatprep.subr.mxu0 %v75
    %151 = vmatpush1.msra.mxu0 %v74
    %152 = vmatprep.subr.mxu0 %v77
    %153 = vmatpush1.msra.mxu0 %v76
    %154 = vmatprep.subr.mxu0 %v79
    %155 = vmatpush1.msra.mxu0 %v78
    %156 = vmatprep.subr.mxu0 %v81
    %157 = vmatpush1.msra.mxu0 %v80
    %158 = vmatprep.subr.mxu0 %v83
    %159 = vmatpush1.msra.mxu0 %v82
    %160 = vmatprep.subr.mxu0 %v85
    %161 = vmatpush1.msra.mxu0 %v84
    %162 = vmatprep.subr.mxu0 %v87
    %163 = vmatpush1.msra.mxu0 %v86
    %164 = vmatprep.subr.mxu0 %v89
    %165 = vmatpush1.msra.mxu0 %v88
    %166 = vmatprep.subr.mxu0 %v91
    %167 = vmatpush1.msra.mxu0 %v90
    %168 = vmatprep.subr.mxu0 %v93
    %169 = vmatpush1.msra.mxu0 %v92
    %170 = vmatprep.subr.mxu0 %v95
    %171 = vmatpush1.msra.mxu0 %v94
    %172 = vmatprep.subr.mxu0 %v97
    %173 = vmatpush1.msra.mxu0 %v96
    %174 = vmatprep.subr.mxu0 %v99
    %175 = vmatpush1.msra.mxu0 %v98
    %176 = vmatprep.subr.mxu0 %v101
    %177 = vmatpush1.msra.mxu0 %v100
    %178 = vmatprep.subr.mxu0 %v103
    %179 = vmatpush1.msra.mxu0 %v102
    %180 = vmatprep.subr.mxu0 %v105
    %181 = vmatpush1.msra.mxu0 %v104
    %182 = vmatprep.subr.mxu0 %v107
    %183 = vmatpush1.msra.mxu0 %v106
    %184 = vmatprep.subr.mxu0 %v109
    %185 = vmatpush1.msra.mxu0 %v108
    %186 = vmatprep.subr.mxu0 %v111
    %187 = vmatpush1.msra.mxu0 %v110
    %188 = vmatprep.subr.mxu0 %v113
    %189 = vmatpush1.msra.mxu0 %v112
    %190 = vmatprep.subr.mxu0 %v115
    %191 = vmatpush1.msra.mxu0 %v114
    %192 = vmatprep.subr.mxu0 %v117
    %193 = vmatpush1.msra.mxu0 %v116
    %194 = vmatprep.subr.mxu0 %v119
    %195 = vmatpush1.msra.mxu0 %v118
    %196 = vmatprep.subr.mxu0 %v121
    %197 = vmatpush1.msra.mxu0 %v120
    %198 = vmatprep.mubr.f32.mxu0 %v55
    %199 = vmatmul.mubr.f32.gmra.mrb[0].mxu0 %v54
    %v200 = vpop.f32.mrb[0].mxu0
    %v201 = vadd.f32 %v127, %v200
    %v202 = vpop.f32.mrb[0].mxu0
    %v203 = vadd.f32 %v131, %v202
    %204 = vmatprep.mubr.f32.mxu0 %v57
    %205 = vmatmul.mubr.f32.gmra.mrb[0].mxu0 %v56
    %v206 = vpop.f32.mrb[0].mxu0
    %v207 = vadd.f32 %v127, %v206
    %v208 = vpop.f32.mrb[0].mxu0
    %v209 = vadd.f32 %v131, %v208
    %210 = vdwg.mxu0
    %v211 = vtanh.pop %v201
    %v212 = vtanh.pop %v207
    %v213 = vmul.f32 %v203, 0.5
    %v214 = vmul.f32 %v209, 0.5
    %v215 = vtanh.pop %v213
    %v216 = vtanh.pop %v214
    %v217 = vadd.f32 %v215, 1.0
    %v218 = vadd.f32 %v216, 1.0
    %v219 = vmul.f32 %v217, 0.5
    %v220 = vmul.f32 %v218, 0.5
    %v221 = vsub.f32 %v211, %v54
    %v222 = vsub.f32 %v212, %v56
    %v223 = vmul.f32 %v219, %v221
    %v224 = vmul.f32 %v220, %v222
    %v225 = vadd.f32 %v54, %v223
    %v226 = vadd.f32 %v56, %v224
    %227 = vst [vmem:[#allocation8] sm:$0xff] %v225
    %228 = vst [vmem:[#allocation8 + $0x8] sm:$0xff] %v226
    // Predicated region
    $region26: #{tpu_custom_call.1} parent=1 // pred_check
      _
    $region27: #{tpu_custom_call.1} parent=1 // pred_check_branch
      %230 = sbr.rel (0) target = $region29
    $region28: #{tpu_custom_call.1} parent=1 // pred_region
      %s232 = ssub.s32 256, 256
      %233 = vsyncadd [#allocation4], %s232
      %s234 = sshll.u32 [#allocation8], 4
      %s235 = int_to_ptr.vmem [resolvable:$true] %s234
      %240 = dma.vmem_to_hbm [thread:$0]  %s235, 256, %s3, [#allocation4], 128, 128, 8
    $region29: #{tpu_custom_call.1} parent=1 // pred_fallthru
      _
    // Predicated region
    $region30: #{tpu_custom_call.1} parent=1 // pred_check
      _
    $region31: #{tpu_custom_call.1} parent=1 // pred_check_branch
      %242 = sbr.rel (0) target = $region33
    $region32: #{tpu_custom_call.1} parent=1 // pred_region
      %243 = dma.done [#allocation4], 256
    $region33: #{tpu_custom_call.1} parent=1 // pred_fallthru
      _
    %244 = vsyncpa [#allocation3], 1
    %245 = vsyncpa [#allocation6], 1
    %246 = vsyncpa [#allocation4], 1

// kernel: tpu_custom_call.1
$region0: #{tpu_custom_call.1}
  #allocation0 [shape = 'u32[]', space=smem, size = 0x4, offset = 0x4, fixed_abs, tag = 'smem constant byte address 0x4 - core index']
  #allocation1 [shape = 'u32[144,128]{1,0:T(1,128)}', space=vmem, size = 0x12000, scoped, tag = 'internal scratch']
  %s0 = inlined_call_operand.hbm [shape: f32[16,256], index: 0, kind: input, shape index: {}]
  %s1 = inlined_call_operand.hbm [shape: f32[256,256], index: 1, kind: input, shape index: {}]
  %s2 = inlined_call_operand.hbm [shape: f32[1,256], index: 2, kind: input, shape index: {}]
  %s3 = inlined_call_operand.hbm [shape: f32[16,128], index: 3, kind: output, shape index: {}]
  %s4 = sld [smem:[#allocation0]]
  $region34: #{tpu_custom_call.1} parent=0
    _
  %s6 = ssub.s32 1, %s4
  %s7 = scalar_select 0, %s6, %s4
  $region1: #{tpu_custom_call.1} parent=0
    #allocation2 [shape = 'u8[16384]{0}', space=vmem, size = 0x4000, scoped, tag = 'input window, operand 0, single buffered']
    #allocation3 [shape = 's32[1]{0}', space=sflag, size = 0x4, scoped, tag = 'scoped memory for tpu_custom_call.1']
    #allocation4 [shape = 's32[1]{0}', space=sflag, size = 0x4, scoped, tag = 'scoped memory for tpu_custom_call.1']
    #allocation5 [shape = 'u8[262144]{0}', space=vmem, size = 0x40000, scoped, tag = 'input window, operand 1, single buffered']
    #allocation6 [shape = 's32[1]{0}', space=sflag, size = 0x4, scoped, tag = 'scoped memory for tpu_custom_call.1']
    #allocation7 [shape = 'u8[1024]{0}', space=vmem, size = 0x400, scoped, tag = 'input window, operand 2, single buffered']
    #allocation8 [shape = 'u8[8192]{0}', space=vmem, size = 0x2000, scoped, tag = 'output window, operand 0, single buffered']
    %8 = vsyncpa [#allocation3], 0
    %9 = vsyncpa [#allocation6], 0
    %10 = vsyncpa [#allocation4], 0
    // Predicated region
    $region2: #{tpu_custom_call.1} parent=1 // pred_check
      _
    $region3: #{tpu_custom_call.1} parent=1 // pred_check_branch
      %12 = sbr.rel (0) target = $region5
    $region4: #{tpu_custom_call.1} parent=1 // pred_region
      %s14 = ssub.s32 512, 512
      %15 = vsyncadd [#allocation3], %s14
      %s16 = sshll.u32 [#allocation2], 4
      %s17 = int_to_ptr.vmem [resolvable:$true] %s16
      %22 = dma.hbm_to_vmem [thread:$0]  %s0, 512, %s17, [#allocation3], 256, 256, 16
    $region5: #{tpu_custom_call.1} parent=1 // pred_fallthru
      _
    // Predicated region
    $region6: #{tpu_custom_call.1} parent=1 // pred_check
      _
    $region7: #{tpu_custom_call.1} parent=1 // pred_check_branch
      %24 = sbr.rel (0) target = $region9
    $region8: #{tpu_custom_call.1} parent=1 // pred_region
      %s26 = ssub.s32 8192, 8192
      %27 = vsyncadd [#allocation6], %s26
      %s28 = sshll.u32 [#allocation5], 4
      %s29 = int_to_ptr.vmem [resolvable:$true] %s28
      %34 = dma.hbm_to_vmem [thread:$0]  %s1, 8192, %s29, [#allocation6], 256, 256, 16
    $region9: #{tpu_custom_call.1} parent=1 // pred_fallthru
      _
    // Predicated region
    $region10: #{tpu_custom_call.1} parent=1 // pred_check
      _
    $region11: #{tpu_custom_call.1} parent=1 // pred_check_branch
      %36 = sbr.rel (0) target = $region13
    $region12: #{tpu_custom_call.1} parent=1 // pred_region
      %s38 = ssub.s32 32, 32
      %39 = vsyncadd [#allocation6], %s38
      %s41 = sshll.u32 [#allocation7], 4
      %s42 = int_to_ptr.vmem [resolvable:$true] %s41
      %44 = dma.hbm_to_vmem [thread:$0]  %s2, 32, %s42, [#allocation6]
    $region13: #{tpu_custom_call.1} parent=1 // pred_fallthru
      _
    // Predicated region
    $region14: #{tpu_custom_call.1} parent=1 // pred_check
      _
    $region15: #{tpu_custom_call.1} parent=1 // pred_check_branch
      %46 = sbr.rel (0) target = $region17
    $region16: #{tpu_custom_call.1} parent=1 // pred_region
      %47 = dma.done [#allocation3], 512
    $region17: #{tpu_custom_call.1} parent=1 // pred_fallthru
      _
    // Predicated region
    $region18: #{tpu_custom_call.1} parent=1 // pred_check
      _
    $region19: #{tpu_custom_call.1} parent=1 // pred_check_branch
      %49 = sbr.rel (0) target = $region21
    $region20: #{tpu_custom_call.1} parent=1 // pred_region
      %50 = dma.done [#allocation6], 8192
    $region21: #{tpu_custom_call.1} parent=1 // pred_fallthru
      _
    // Predicated region
    $region22: #{tpu_custom_call.1} parent=1 // pred_check
      _
    $region23: #{tpu_custom_call.1} parent=1 // pred_check_branch
      %52 = sbr.rel (0) target = $region25
    $region24: #{tpu_custom_call.1} parent=1 // pred_region
      %53 = dma.done [#allocation6], 32
    $region25: #{tpu_custom_call.1} parent=1 // pred_fallthru
      _
    %v54 = vld [vmem:[#allocation2] sm:$0xff]
    %v55 = vld [vmem:[#allocation2 + $0x8] sm:$0xff]
    %v56 = vld [vmem:[#allocation2 + $0x10] sm:$0xff]
    %v57 = vld [vmem:[#allocation2 + $0x18] sm:$0xff]
    %v58 = vld [vmem:[#allocation5] sm:$0xff]
    %v59 = vld [vmem:[#allocation5 + $0x8] sm:$0xff]
    %v60 = vld [vmem:[#allocation5 + $0x10] sm:$0xff]
    %v61 = vld [vmem:[#allocation5 + $0x18] sm:$0xff]
    %v62 = vld [vmem:[#allocation5 + $0x20] sm:$0xff]
    %v63 = vld [vmem:[#allocation5 + $0x28] sm:$0xff]
    %v64 = vld [vmem:[#allocation5 + $0x30] sm:$0xff]
    %v65 = vld [vmem:[#allocation5 + $0x38] sm:$0xff]
    %v66 = vld [vmem:[#allocation5 + $0x40] sm:$0xff]
    %v67 = vld [vmem:[#allocation5 + $0x48] sm:$0xff]
    %v68 = vld [vmem:[#allocation5 + $0x50] sm:$0xff]
    %v69 = vld [vmem:[#allocation5 + $0x58] sm:$0xff]
    %v70 = vld [vmem:[#allocation5 + $0x60] sm:$0xff]
    %v71 = vld [vmem:[#allocation5 + $0x68] sm:$0xff]
    %v72 = vld [vmem:[#allocation5 + $0x70] sm:$0xff]
    %v73 = vld [vmem:[#allocation5 + $0x78] sm:$0xff]
    %v74 = vld [vmem:[#allocation5 + $0x80] sm:$0xff]
    %v75 = vld [vmem:[#allocation5 + $0x88] sm:$0xff]
    %v76 = vld [vmem:[#allocation5 + $0x90] sm:$0xff]
    %v77 = vld [vmem:[#allocation5 + $0x98] sm:$0xff]
    %v78 = vld [vmem:[#allocation5 + $0xa0] sm:$0xff]
    %v79 = vld [vmem:[#allocation5 + $0xa8] sm:$0xff]
    %v80 = vld [vmem:[#allocation5 + $0xb0] sm:$0xff]
    %v81 = vld [vmem:[#allocation5 + $0xb8] sm:$0xff]
    %v82 = vld [vmem:[#allocation5 + $0xc0] sm:$0xff]
    %v83 = vld [vmem:[#allocation5 + $0xc8] sm:$0xff]
    %v84 = vld [vmem:[#allocation5 + $0xd0] sm:$0xff]
    %v85 = vld [vmem:[#allocation5 + $0xd8] sm:$0xff]
    %v86 = vld [vmem:[#allocation5 + $0xe0] sm:$0xff]
    %v87 = vld [vmem:[#allocation5 + $0xe8] sm:$0xff]
    %v88 = vld [vmem:[#allocation5 + $0xf0] sm:$0xff]
    %v89 = vld [vmem:[#allocation5 + $0xf8] sm:$0xff]
    %v90 = vld [vmem:[#allocation5 + $0x100] sm:$0xff]
    %v91 = vld [vmem:[#allocation5 + $0x108] sm:$0xff]
    %v92 = vld [vmem:[#allocation5 + $0x110] sm:$0xff]
    %v93 = vld [vmem:[#allocation5 + $0x118] sm:$0xff]
    %v94 = vld [vmem:[#allocation5 + $0x120] sm:$0xff]
    %v95 = vld [vmem:[#allocation5 + $0x128] sm:$0xff]
    %v96 = vld [vmem:[#allocation5 + $0x130] sm:$0xff]
    %v97 = vld [vmem:[#allocation5 + $0x138] sm:$0xff]
    %v98 = vld [vmem:[#allocation5 + $0x140] sm:$0xff]
    %v99 = vld [vmem:[#allocation5 + $0x148] sm:$0xff]
    %v100 = vld [vmem:[#allocation5 + $0x150] sm:$0xff]
    %v101 = vld [vmem:[#allocation5 + $0x158] sm:$0xff]
    %v102 = vld [vmem:[#allocation5 + $0x160] sm:$0xff]
    %v103 = vld [vmem:[#allocation5 + $0x168] sm:$0xff]
    %v104 = vld [vmem:[#allocation5 + $0x170] sm:$0xff]
    %v105 = vld [vmem:[#allocation5 + $0x178] sm:$0xff]
    %v106 = vld [vmem:[#allocation5 + $0x180] sm:$0xff]
    %v107 = vld [vmem:[#allocation5 + $0x188] sm:$0xff]
    %v108 = vld [vmem:[#allocation5 + $0x190] sm:$0xff]
    %v109 = vld [vmem:[#allocation5 + $0x198] sm:$0xff]
    %v110 = vld [vmem:[#allocation5 + $0x1a0] sm:$0xff]
    %v111 = vld [vmem:[#allocation5 + $0x1a8] sm:$0xff]
    %v112 = vld [vmem:[#allocation5 + $0x1b0] sm:$0xff]
    %v113 = vld [vmem:[#allocation5 + $0x1b8] sm:$0xff]
    %v114 = vld [vmem:[#allocation5 + $0x1c0] sm:$0xff]
    %v115 = vld [vmem:[#allocation5 + $0x1c8] sm:$0xff]
    %v116 = vld [vmem:[#allocation5 + $0x1d0] sm:$0xff]
    %v117 = vld [vmem:[#allocation5 + $0x1d8] sm:$0xff]
    %v118 = vld [vmem:[#allocation5 + $0x1e0] sm:$0xff]
    %v119 = vld [vmem:[#allocation5 + $0x1e8] sm:$0xff]
    %v120 = vld [vmem:[#allocation5 + $0x1f0] sm:$0xff]
    %v121 = vld [vmem:[#allocation5 + $0x1f8] sm:$0xff]
    %v122 = vld [vmem:[#allocation7] sm:$0x3]
    %v124 = vlaneseq
    %v125 = vshrl.u32 %v124, 7
    %v126 = vsub.s32 0, %v125
    %v127 = vrot.slane %v122, %v126
    %v128 = vlaneseq
    %v129 = vshrl.u32 %v128, 7
    %v130 = vsub.s32 1, %v129
    %v131 = vrot.slane %v122, %v130
    %134 = vmatprep.subr.mxu0 %v59
    %135 = vmatpush1.msra.mxu0 %v58
    %136 = vmatprep.subr.mxu0 %v61
    %137 = vmatpush1.msra.mxu0 %v60
    %138 = vmatprep.subr.mxu0 %v63
    %139 = vmatpush1.msra.mxu0 %v62
    %140 = vmatprep.subr.mxu0 %v65
    %141 = vmatpush1.msra.mxu0 %v64
    %142 = vmatprep.subr.mxu0 %v67
    %143 = vmatpush1.msra.mxu0 %v66
    %144 = vmatprep.subr.mxu0 %v69
    %145 = vmatpush1.msra.mxu0 %v68
    %146 = vmatprep.subr.mxu0 %v71
    %147 = vmatpush1.msra.mxu0 %v70
    %148 = vmatprep.subr.mxu0 %v73
    %149 = vmatpush1.msra.mxu0 %v72
    %150 = vmatprep.subr.mxu0 %v75
    %151 = vmatpush1.msra.mxu0 %v74
    %152 = vmatprep.subr.mxu0 %v77
    %153 = vmatpush1.msra.mxu0 %v76
    %154 = vmatprep.subr.mxu0 %v79
    %155 = vmatpush1.msra.mxu0 %v78
    %156 = vmatprep.subr.mxu0 %v81
    %157 = vmatpush1.msra.mxu0 %v80
    %158 = vmatprep.subr.mxu0 %v83
    %159 = vmatpush1.msra.mxu0 %v82
    %160 = vmatprep.subr.mxu0 %v85
    %161 = vmatpush1.msra.mxu0 %v84
    %162 = vmatprep.subr.mxu0 %v87
    %163 = vmatpush1.msra.mxu0 %v86
    %164 = vmatprep.subr.mxu0 %v89
    %165 = vmatpush1.msra.mxu0 %v88
    %166 = vmatprep.subr.mxu0 %v91
    %167 = vmatpush1.msra.mxu0 %v90
    %168 = vmatprep.subr.mxu0 %v93
    %169 = vmatpush1.msra.mxu0 %v92
    %170 = vmatprep.subr.mxu0 %v95
    %171 = vmatpush1.msra.mxu0 %v94
    %172 = vmatprep.subr.mxu0 %v97
    %173 = vmatpush1.msra.mxu0 %v96
    %174 = vmatprep.subr.mxu0 %v99
    %175 = vmatpush1.msra.mxu0 %v98
    %176 = vmatprep.subr.mxu0 %v101
    %177 = vmatpush1.msra.mxu0 %v100
    %178 = vmatprep.subr.mxu0 %v103
    %179 = vmatpush1.msra.mxu0 %v102
    %180 = vmatprep.subr.mxu0 %v105
    %181 = vmatpush1.msra.mxu0 %v104
    %182 = vmatprep.subr.mxu0 %v107
    %183 = vmatpush1.msra.mxu0 %v106
    %184 = vmatprep.subr.mxu0 %v109
    %185 = vmatpush1.msra.mxu0 %v108
    %186 = vmatprep.subr.mxu0 %v111
    %187 = vmatpush1.msra.mxu0 %v110
    %188 = vmatprep.subr.mxu0 %v113
    %189 = vmatpush1.msra.mxu0 %v112
    %190 = vmatprep.subr.mxu0 %v115
    %191 = vmatpush1.msra.mxu0 %v114
    %192 = vmatprep.subr.mxu0 %v117
    %193 = vmatpush1.msra.mxu0 %v116
    %194 = vmatprep.subr.mxu0 %v119
    %195 = vmatpush1.msra.mxu0 %v118
    %196 = vmatprep.subr.mxu0 %v121
    %197 = vmatpush1.msra.mxu0 %v120
    %198 = vmatprep.mubr.f32.mxu0 %v55
    %199 = vmatmul.mubr.f32.gmra.mrb[0].mxu0 %v54
    %v200 = vpop.f32.mrb[0].mxu0
    %v201 = vadd.f32 %v127, %v200
    %v202 = vpop.f32.mrb[0].mxu0
    %v203 = vadd.f32 %v131, %v202
    %204 = vmatprep.mubr.f32.mxu0 %v57
    %205 = vmatmul.mubr.f32.gmra.mrb[0].mxu0 %v56
    %v206 = vpop.f32.mrb[0].mxu0
    %v207 = vadd.f32 %v127, %v206
    %v208 = vpop.f32.mrb[0].mxu0
    %v209 = vadd.f32 %v131, %v208
    %210 = vdwg.mxu0
    %v211 = vtanh.pop %v201
    %v212 = vtanh.pop %v207
    %v213 = vmul.f32 %v203, 0.5
    %v214 = vmul.f32 %v209, 0.5
    %v215 = vtanh.pop %v213
    %v216 = vtanh.pop %v214
    %v217 = vadd.f32 %v215, 1.0
    %v218 = vadd.f32 %v216, 1.0
    %v219 = vmul.f32 %v217, 0.5
    %v220 = vmul.f32 %v218, 0.5
    %v221 = vsub.f32 %v211, %v54
    %v222 = vsub.f32 %v212, %v56
    %v223 = vmul.f32 %v219, %v221
    %v224 = vmul.f32 %v220, %v222
    %v225 = vadd.f32 %v54, %v223
    %v226 = vadd.f32 %v56, %v224
    %227 = vst [vmem:[#allocation8] sm:$0xff] %v225
    %228 = vst [vmem:[#allocation8 + $0x8] sm:$0xff] %v226
    // Predicated region
    $region26: #{tpu_custom_call.1} parent=1 // pred_check
      _
    $region27: #{tpu_custom_call.1} parent=1 // pred_check_branch
      %230 = sbr.rel (0) target = $region29
    $region28: #{tpu_custom_call.1} parent=1 // pred_region
      %s232 = ssub.s32 256, 256
      %233 = vsyncadd [#allocation4], %s232
      %s234 = sshll.u32 [#allocation8], 4
      %s235 = int_to_ptr.vmem [resolvable:$true] %s234
      %240 = dma.vmem_to_hbm [thread:$0]  %s235, 256, %s3, [#allocation4], 128, 128, 8
    $region29: #{tpu_custom_call.1} parent=1 // pred_fallthru
      _
    // Predicated region
    $region30: #{tpu_custom_call.1} parent=1 // pred_check
      _
    $region31: #{tpu_custom_call.1} parent=1 // pred_check_branch
      %242 = sbr.rel (0) target = $region33
    $region32: #{tpu_custom_call.1} parent=1 // pred_region
      %243 = dma.done [#allocation4], 256
    $region33: #{tpu_custom_call.1} parent=1 // pred_fallthru
      _
    %244 = vsyncpa [#allocation3], 1
    %245 = vsyncpa [#allocation6], 1
    %246 = vsyncpa [#allocation4], 1

</llo_original>
